<compile_context>
chip_gen: v7x
topology: tpu7x:2x2x1
jax: 0.10.0
libtpu: 0.0.40
codegen_flags: <defaults>
</compile_context>

<pallas_src>
import functools

import jax
import jax.numpy as jnp
from jax import lax
from jax.experimental import pallas as pl
from jax.experimental.pallas import tpu as pltpu


def _ferguson_fused_kernel(a_ref, x_ref, w_ref, b_ref, out_ref, acc_ref,
                           *, n_inner, tn, mask_tail):
    j = pl.program_id(1)

    @pl.when(j == 0)
    def _init():
        acc_ref[...] = jnp.zeros_like(acc_ref)

    # Stub navi layer: support = (sum_r A[r]) @ X, accumulated tile-by-tile.
    a_sum = jnp.sum(a_ref[...], axis=0)                          # [tm, tn]
    x = x_ref[...]                                               # [tn, D]
    if mask_tail:
        # Last reduction tile is partial: zero out-of-range columns/rows so
        # unspecified out-of-bounds data cannot contaminate the accumulator.
        col = j * tn + lax.broadcasted_iota(jnp.int32, a_sum.shape, 1)
        a_sum = jnp.where(col < n_inner, a_sum, 0.0)
        row = j * tn + lax.broadcasted_iota(jnp.int32, x.shape, 0)
        x = jnp.where(row < n_inner, x, 0.0)
    acc_ref[...] += jnp.dot(a_sum, x, preferred_element_type=jnp.float32)

    @pl.when(j == pl.num_programs(1) - 1)
    def _finalize():
        out_ref[...] = (
            jnp.dot(acc_ref[...], w_ref[...], preferred_element_type=jnp.float32)
            + b_ref[...]
        ).astype(out_ref.dtype)


def _round_up(x, m):
    return ((x + m - 1) // m) * m


def manager_ferguson_forward(X, adjacencies, w, bias, *, tm=256, tn=512):
    """X: [N, D], adjacencies: [R, N, N] dense, w: [K, D, D_out], bias: [D_out]."""
    K, D, D_out = w.shape
    N = X.shape[0]
    R = adjacencies.shape[0]
    f32 = jnp.float32

    # TODO(synk): Navi_Diego / Navi_Iniesta bodies are not in the reference
    # source; the stand-in navi layer for every k is sum_r A[r] @ X.  Because
    # that stub is identical across k, cat(supports) @ w.view(K*D, D_out)
    # collapses exactly to support @ (sum_k w[k]); with real distinct navi
    # layers, replace this pre-sum with a K reduction grid axis streaming
    # per-k supports against per-k (D, D_out) weight tiles.
    inv_k = 1.0 / float(K)
    w_eff = jnp.sum(w.astype(f32), axis=0) * inv_k               # [D, D_out]
    bias_eff = (bias.astype(f32) * inv_k).reshape(1, D_out)      # [1, D_out]

    # Lane-dense output: pad D_out (weights/bias only -- tiny) to a 128 multiple.
    dpad = (-D_out) % 128
    if dpad:
        w_eff = jnp.pad(w_eff, ((0, 0), (0, dpad)))
        bias_eff = jnp.pad(bias_eff, ((0, 0), (0, dpad)))
    dop = D_out + dpad

    A = adjacencies.astype(f32)
    Xf = X.astype(f32)

    # ---- tile selection ----------------------------------------------------
    # Row tile (parallel axis): multiple of 8; keep >=2 grid steps when N
    # allows so v7x can shard rows across its 2 TensorCores.
    if N <= tm:
        half = _round_up(-(-N // 2), 8)
        tm = half if 8 <= half < N else N
    # Reduction tile (columns of A / rows of X): multiple of 128 or full dim.
    tn = N if N <= tn else tn

    # Conservative scoped-VMEM budget (double-buffered inputs/outputs + scratch).
    def footprint(tm_, tn_):
        return 4 * (2 * R * tm_ * tn_ + 2 * tn_ * D + 2 * D * dop
                    + 2 * dop + 2 * tm_ * dop + tm_ * D)

    budget = 14 * 1024 * 1024
    while footprint(tm, tn) > budget and tn > 128:
        tn = max(128, (tn // 2) // 128 * 128)
    while footprint(tm, tn) > budget and tm > 8:
        tm = max(8, (tm // 2) // 8 * 8)

    grid = (pl.cdiv(N, tm), pl.cdiv(N, tn))
    kernel = functools.partial(
        _ferguson_fused_kernel, n_inner=N, tn=tn, mask_tail=(N % tn != 0))

    out = pl.pallas_call(
        kernel,
        out_shape=jax.ShapeDtypeStruct((N, dop), f32),
        grid_spec=pltpu.PrefetchScalarGridSpec(
            num_scalar_prefetch=0,
            grid=grid,
            in_specs=[
                # Row/column tile of all R adjacency slices (streamed).
                pl.BlockSpec((R, tm, tn), lambda i, j: (0, i, j)),
                # Matching row tile of X (streamed along the reduction axis).
                pl.BlockSpec((tn, D), lambda i, j: (j, 0)),
                # Folded combine weights / bias: grid-invariant, VMEM-resident.
                pl.BlockSpec((D, dop), lambda i, j: (0, 0)),
                pl.BlockSpec((1, dop), lambda i, j: (0, 0)),
            ],
            out_specs=pl.BlockSpec((tm, dop), lambda i, j: (i, 0)),
            scratch_shapes=[pltpu.VMEM((tm, D), f32)],
        ),
        compiler_params=pltpu.CompilerParams(
            dimension_semantics=("parallel", "arbitrary"),
        ),
    )(A, Xf, w_eff, bias_eff)

    return out[:, :D_out] if dpad else out


if __name__ == "__main__":
    key = jax.random.PRNGKey(0)
    kx, ka, kw, kb = jax.random.split(key, 4)

    # Small shapes consistent with the module: N nodes, D = args['dimension'],
    # K = len(['contextual', 'translational']), R = args['number relations'].
    N, D, K, R = 256, 128, 2, 3
    D_out = D   # Manager_Ferguson: input_size == output_size

    X = jax.random.normal(kx, (N, D), dtype=jnp.float32)
    adjacencies = jax.random.normal(ka, (R, N, N), dtype=jnp.float32) * 0.1
    # Random (non-identity) parameters so the MXU path / K*D ordering is exercised.
    w = jax.random.normal(kw, (K, D, D_out), dtype=jnp.float32) * 0.05
    bias = jax.random.normal(kb, (D_out,), dtype=jnp.float32)

    out = manager_ferguson_forward(X, adjacencies, w, bias)
    jax.block_until_ready(out)

    # Pure-JAX reference of Manager_Ferguson.forward with the same navi stub.
    support = jnp.einsum("rnm,md->nd", adjacencies, X)           # stub layer, all k
    tmp = jnp.concatenate([support] * K, axis=1)                 # [N, K*D]
    ref = (tmp @ w.reshape(K * D, D_out) + bias[None, :]) / K

    assert out.shape == ref.shape
    err = float(jnp.max(jnp.abs(out - ref)))
    assert jnp.allclose(out, ref, atol=1e-3, rtol=1e-4), f"mismatch, max abs err={err}"

    print("KERNEL_OK")
</pallas_src>

<mosaic_0001>
module attributes {stable_mosaic.version = 11 : i64} {
  func.func @_ferguson_fused_kernel(%arg0: i32, %arg1: i32, %arg2: memref<3x128x256xf32, #tpu.memory_space<vmem>>, %arg3: memref<256x128xf32, #tpu.memory_space<vmem>>, %arg4: memref<128x128xf32, #tpu.memory_space<vmem>>, %arg5: memref<1x128xf32, #tpu.memory_space<vmem>>, %arg6: memref<128x128xf32, #tpu.memory_space<vmem>>, %arg7: memref<128x128xf32, #tpu.memory_space<vmem>>) attributes {dimension_semantics = [#tpu.dimension_semantics<parallel>, #tpu.dimension_semantics<arbitrary>], iteration_bounds = array<i64: 2, 1>, scalar_prefetch = 0 : i64, scratch_operands = 1 : i64, tpu.core_type = #tpu.core_type<tc>, window_params = [{transform_indices = @transform_0, window_bounds = array<i64: 3, 128, 256>}, {transform_indices = @transform_1, window_bounds = array<i64: 256, 128>}, {pipeline_mode = #tpu.pipeline_mode<synchronous>, transform_indices = @transform_2, window_bounds = array<i64: 128, 128>}, {pipeline_mode = #tpu.pipeline_mode<synchronous>, transform_indices = @transform_3, window_bounds = array<i64: 1, 128>}, {transform_indices = @transform_4, window_bounds = array<i64: 128, 128>}]} {
    %c0_i32 = arith.constant 0 : i32
    %0 = arith.cmpi eq, %arg1, %c0_i32 : i32
    %1 = arith.extui %0 : i1 to i32
    %c0_i32_0 = arith.constant 0 : i32
    %2 = arith.cmpi ne, %1, %c0_i32_0 : i32
    scf.if %2 {
      %cst_12 = arith.constant 0.000000e+00 : f32
      %13 = vector.broadcast %cst_12 : f32 to vector<128x128xf32>
      %c0_13 = arith.constant 0 : index
      %c0_14 = arith.constant 0 : index
      %14 = vector.load %arg7[%c0_13, %c0_14] : memref<128x128xf32, #tpu.memory_space<vmem>>, vector<128x128xf32>
      tpu.vector_store %arg7[%c0_13, %c0_14], %13 {strides = array<i32>} : memref<128x128xf32, #tpu.memory_space<vmem>>, vector<128x128xf32>,
    } else {
    }
    %c0 = arith.constant 0 : index
    %c0_1 = arith.constant 0 : index
    %c0_2 = arith.constant 0 : index
    %3 = vector.load %arg2[%c0, %c0_1, %c0_2] : memref<3x128x256xf32, #tpu.memory_space<vmem>>, vector<3x128x256xf32>
    %cst = arith.constant dense<0.000000e+00> : vector<128x256xf32>
    %4 = vector.multi_reduction <add>, %3, %cst [0] : vector<3x128x256xf32> to vector<128x256xf32>
    %c0_3 = arith.constant 0 : index
    %c0_4 = arith.constant 0 : index
    %5 = vector.load %arg3[%c0_3, %c0_4] : memref<256x128xf32, #tpu.memory_space<vmem>>, vector<256x128xf32>
    %c0_5 = arith.constant 0 : index
    %c0_6 = arith.constant 0 : index
    %6 = vector.load %arg7[%c0_5, %c0_6] : memref<128x128xf32, #tpu.memory_space<vmem>>, vector<128x128xf32>
    %cst_7 = arith.constant dense<0.000000e+00> : vector<128x128xf32>
    %7 = tpu.matmul %4, %5, %cst_7 {dimension_numbers = #tpu.dot_dimension_numbers<[1], [0], [0], [1], [0, 0, 1, 1], [], []>} : vector<128x256xf32>, vector<256x128xf32>, vector<128x128xf32> -> vector<128x128xf32>
    %8 = arith.addf %6, %7 : vector<128x128xf32>
    %c0_8 = arith.constant 0 : index
    %c0_9 = arith.constant 0 : index
    %9 = vector.load %arg7[%c0_8, %c0_9] : memref<128x128xf32, #tpu.memory_space<vmem>>, vector<128x128xf32>
    tpu.vector_store %arg7[%c0_8, %c0_9], %8 {strides = array<i32>} : memref<128x128xf32, #tpu.memory_space<vmem>>, vector<128x128xf32>,
    %c0_i32_10 = arith.constant 0 : i32
    %10 = arith.cmpi eq, %arg1, %c0_i32_10 : i32
    %11 = arith.extui %10 : i1 to i32
    %c0_i32_11 = arith.constant 0 : i32
    %12 = arith.cmpi ne, %11, %c0_i32_11 : i32
    scf.if %12 {
      %c0_12 = arith.constant 0 : index
      %c0_13 = arith.constant 0 : index
      %13 = vector.load %arg7[%c0_12, %c0_13] : memref<128x128xf32, #tpu.memory_space<vmem>>, vector<128x128xf32>
      %c0_14 = arith.constant 0 : index
      %c0_15 = arith.constant 0 : index
      %14 = vector.load %arg4[%c0_14, %c0_15] : memref<128x128xf32, #tpu.memory_space<vmem>>, vector<128x128xf32>
      %cst_16 = arith.constant dense<0.000000e+00> : vector<128x128xf32>
      %15 = tpu.matmul %13, %14, %cst_16 {dimension_numbers = #tpu.dot_dimension_numbers<[1], [0], [0], [1], [0, 0, 1, 1], [], []>} : vector<128x128xf32>, vector<128x128xf32>, vector<128x128xf32> -> vector<128x128xf32>
      %c0_17 = arith.constant 0 : index
      %c0_18 = arith.constant 0 : index
      %16 = vector.load %arg5[%c0_17, %c0_18] : memref<1x128xf32, #tpu.memory_space<vmem>>, vector<1x128xf32>
      %17 = vector.broadcast %16 : vector<1x128xf32> to vector<128x128xf32>
      %18 = arith.addf %15, %17 : vector<128x128xf32>
      %c0_19 = arith.constant 0 : index
      %c0_20 = arith.constant 0 : index
      %19 = vector.load %arg6[%c0_19, %c0_20] : memref<128x128xf32, #tpu.memory_space<vmem>>, vector<128x128xf32>
      tpu.vector_store %arg6[%c0_19, %c0_20], %18 {strides = array<i32>} : memref<128x128xf32, #tpu.memory_space<vmem>>, vector<128x128xf32>,
    } else {
    }
    return
  }
  func.func @transform_0(%arg0: i32, %arg1: i32) -> (i32, i32, i32) {
    %c0_i32 = arith.constant 0 : i32
    %c0_i32_0 = arith.constant 0 : i32
    return %c0_i32, %arg0, %arg1 : i32, i32, i32
  }
  func.func @transform_1(%arg0: i32, %arg1: i32) -> (i32, i32) {
    %c0_i32 = arith.constant 0 : i32
    %c0_i32_0 = arith.constant 0 : i32
    return %arg1, %c0_i32 : i32, i32
  }
  func.func @transform_2(%arg0: i32, %arg1: i32) -> (i32, i32) {
    %c0_i32 = arith.constant 0 : i32
    %c0_i32_0 = arith.constant 0 : i32
    %c0_i32_1 = arith.constant 0 : i32
    return %c0_i32, %c0_i32_0 : i32, i32
  }
  func.func @transform_3(%arg0: i32, %arg1: i32) -> (i32, i32) {
    %c0_i32 = arith.constant 0 : i32
    %c0_i32_0 = arith.constant 0 : i32
    %c0_i32_1 = arith.constant 0 : i32
    return %c0_i32, %c0_i32_0 : i32, i32
  }
  func.func @transform_4(%arg0: i32, %arg1: i32) -> (i32, i32) {
    %c0_i32 = arith.constant 0 : i32
    %c0_i32_0 = arith.constant 0 : i32
    return %arg0, %c0_i32 : i32, i32
  }
}

</mosaic_0001>

<llo_original>
// kernel: tpu_custom_call.1
$region0: #{tpu_custom_call.1}
  #allocation0 [shape = 'u32[]', space=smem, size = 0x4, offset = 0x4, fixed_abs, tag = 'smem constant byte address 0x4 - core index']
  #allocation1 [shape = 'u32[144,128]{1,0:T(1,128)}', space=vmem, size = 0x12000, scoped, tag = 'internal scratch']
  #allocation2 [shape = 'f32[128,128]{1,0:T(8,128)}', space=vmem, size = 0x10000, scoped, tag = 'scratch operand']
  #allocation10 [shape = 's32[]', space=sflag, size = 0x4, offset = 0, fixed_abs, tag = 'sflag constant byte address 0x0 - dummy sync flag']
  %s0 = inlined_call_operand.hbm [shape: f32[3,256,256], index: 0, kind: input, shape index: {}]
  %s1 = inlined_call_operand.hbm [shape: f32[256,128], index: 1, kind: input, shape index: {}]
  %s2 = inlined_call_operand.hbm [shape: f32[128,128], index: 2, kind: input, shape index: {}]
  %s3 = inlined_call_operand.vmem [shape: f32[1,128], index: 3, kind: input, shape index: {}]
  %s4 = inlined_call_operand.hbm [shape: f32[256,128], index: 4, kind: output, shape index: {}]
  %s5 = sld [smem:[#allocation0]]
  $region69: #{tpu_custom_call.1} parent=0
    _
  %s7 = ssub.s32 1, %s5
  %s8 = scalar_select 0, %s7, %s5
  $region1: #{tpu_custom_call.1} parent=0
    #allocation3 [shape = 'u8[786432]{0}', space=vmem, size = 0xc0000, scoped, tag = 'input window, operand 0']
    #allocation4 [shape = 's32[2]{0}', space=sflag, size = 0x8, scoped, tag = 'scoped memory for tpu_custom_call.1']
    #allocation5 [shape = 's32[2]{0}', space=sflag, size = 0x8, scoped, tag = 'scoped memory for tpu_custom_call.1']
    #allocation6 [shape = 'u8[131072]{0}', space=vmem, size = 0x20000, scoped, tag = 'input window, operand 1, single buffered']
    #allocation7 [shape = 's32[1]{0}', space=sflag, size = 0x4, scoped, tag = 'scoped memory for tpu_custom_call.1']
    #allocation8 [shape = 'u8[65536]{0}', space=vmem, size = 0x10000, scoped, tag = 'input window, operand 2, single buffered']
    #allocation9 [shape = 'u8[131072]{0}', space=vmem, size = 0x20000, scoped, tag = 'output window, operand 0']
    %9 = vsyncpa [#allocation4], 0
    %s10 = scalar_lea.sflag [#allocation4], 1
    %11 = vsyncpa %s10, 0
    %12 = vsyncpa [#allocation7], 0
    %13 = vsyncpa [#allocation5], 0
    %s14 = scalar_lea.sflag [#allocation5], 1
    %15 = vsyncpa %s14, 0
    loop: start=0, step=1, limit=4
    $region2: #{tpu_custom_call.1} parent=1 // loop_pre_header
      _
    $region3: #{tpu_custom_call.1} parent=1 // loop_header
      %s17 = sphi 0, %s21
      %p18 = scmp.ge.s32.totalorder %s17, 4
      %s24 = sphi 0, %s36
      %s25 = sphi 0, %s32
      %s26 = sphi 0, %s24
      %s27 = sphi 0, %s25
      %s28 = sphi 0, %s26
      %s29 = sphi 0, %s27
      %s41 = sphi 0, %s43
      %s44 = sphi 0, %s41
      %s45 = sphi 0, %s44
      %s61 = sphi 0, %s45
      %s67 = sphi 0, %s69
      %s70 = sphi 0, %s67
      %s71 = sphi 0, %s70
      %s87 = sphi 0, %s71
      %s91 = sphi 0, %s91
      %s93 = sphi 0, %s91
      %s94 = sphi 0, %s93
      %s108 = sphi 0, %s94
      %s112 = sphi 0, %s112
      %s114 = sphi 0, %s112
      %s115 = sphi 0, %s114
      %s129 = sphi 0, %s115
      %s135 = sphi 0, %s137
      %s138 = sphi 0, %s135
      %s139 = sphi 0, %s138
      %s155 = sphi 0, %s139
    $region4: #{tpu_custom_call.1} parent=1 // loop_header_branch
      %20 = sbr.rel (%p18) target = $region8
    $region5: #{tpu_custom_call.1} parent=1 // loop_body
      %s22 = ssub.s32 %s17, 1
      %s23 = ssub.s32 %s17, 2
      %s30 = sadd.s32 1, %s25
      %p31 = scmp.ge.s32.totalorder %s30, 1
      %s32 = scalar_select %p31, 0, %s30
      %s33 = sadd.s32 1, %s24
      %s34 = scalar_select %p31, %s33, %s24
      %p35 = scmp.ge.s32.totalorder %s34, 2
      %s36 = scalar_select %p35, 0, %s34
      %s37 = ssub.s32 %s24, %s36
      %s38 = ssub.s32 %s25, %s32
      %s39 = sor.u32 %s37, %s38
      %p40 = scmp.eq.s32.totalorder %s39, 0
      %s42 = sadd.s32 %s41, 1
      %s43 = scalar_select %p40, %s41, %s42
      %p46 = pneg %p40
      %p47 = scmp.eq.s32.totalorder %s17, 1
      %p48 = por %p46, %p47
      %p49 = scmp.ne.s32.totalorder %s41, %s44
      %p50 = scmp.eq.s32.totalorder %s17, 0
      %p51 = por %p49, %p50
      %p52 = scmp.ne.s32.totalorder %s41, %s44
      %p53 = scmp.eq.s32.totalorder %s22, 1
      %p54 = por %p52, %p53
      %p55 = scmp.ne.s32.totalorder %s44, %s45
      %p56 = scmp.eq.s32.totalorder %s22, 0
      %p57 = por %p55, %p56
      %p58 = scmp.ne.s32.totalorder %s44, %s45
      %p59 = scmp.eq.s32.totalorder %s23, 1
      %p60 = por %p58, %p59
      %p62 = scmp.ne.s32.totalorder %s45, %s61
      %p63 = scmp.eq.s32.totalorder %s23, 0
      %p64 = por %p62, %p63
      %s65 = ssub.s32 %s25, %s32
      %p66 = scmp.eq.s32.totalorder %s65, 0
      %s68 = sadd.s32 %s67, 1
      %s69 = scalar_select %p66, %s67, %s68
      %p72 = pneg %p66
      %p73 = scmp.eq.s32.totalorder %s17, 1
      %p74 = por %p72, %p73
      %p75 = scmp.ne.s32.totalorder %s67, %s70
      %p76 = scmp.eq.s32.totalorder %s17, 0
      %p77 = por %p75, %p76
      %p78 = scmp.ne.s32.totalorder %s67, %s70
      %p79 = scmp.eq.s32.totalorder %s22, 1
      %p80 = por %p78, %p79
      %p81 = scmp.ne.s32.totalorder %s70, %s71
      %p82 = scmp.eq.s32.totalorder %s22, 0
      %p83 = por %p81, %p82
      %p84 = scmp.ne.s32.totalorder %s70, %s71
      %p85 = scmp.eq.s32.totalorder %s23, 1
      %p86 = por %p84, %p85
      %p88 = scmp.ne.s32.totalorder %s71, %s87
      %p89 = scmp.eq.s32.totalorder %s23, 0
      %p90 = por %p88, %p89
      %s92 = sadd.s32 %s91, 1
      %p95 = scmp.eq.s32.totalorder %s17, 1
      %p96 = scmp.ne.s32.totalorder %s91, %s93
      %p97 = scmp.eq.s32.totalorder %s17, 0
      %p98 = por %p96, %p97
      %p99 = scmp.ne.s32.totalorder %s91, %s93
      %p100 = scmp.eq.s32.totalorder %s22, 1
      %p101 = por %p99, %p100
      %p102 = scmp.ne.s32.totalorder %s93, %s94
      %p103 = scmp.eq.s32.totalorder %s22, 0
      %p104 = por %p102, %p103
      %p105 = scmp.ne.s32.totalorder %s93, %s94
      %p106 = scmp.eq.s32.totalorder %s23, 1
      %p107 = por %p105, %p106
      %p109 = scmp.ne.s32.totalorder %s94, %s108
      %p110 = scmp.eq.s32.totalorder %s23, 0
      %p111 = por %p109, %p110
      %s113 = sadd.s32 %s112, 1
      %p116 = scmp.eq.s32.totalorder %s17, 1
      %p117 = scmp.ne.s32.totalorder %s112, %s114
      %p118 = scmp.eq.s32.totalorder %s17, 0
      %p119 = por %p117, %p118
      %p120 = scmp.ne.s32.totalorder %s112, %s114
      %p121 = scmp.eq.s32.totalorder %s22, 1
      %p122 = por %p120, %p121
      %p123 = scmp.ne.s32.totalorder %s114, %s115
      %p124 = scmp.eq.s32.totalorder %s22, 0
      %p125 = por %p123, %p124
      %p126 = scmp.ne.s32.totalorder %s114, %s115
      %p127 = scmp.eq.s32.totalorder %s23, 1
      %p128 = por %p126, %p127
      %p130 = scmp.ne.s32.totalorder %s115, %s129
      %p131 = scmp.eq.s32.totalorder %s23, 0
      %p132 = por %p130, %p131
      %s133 = ssub.s32 %s24, %s36
      %p134 = scmp.eq.s32.totalorder %s133, 0
      %s136 = sadd.s32 %s135, 1
      %s137 = scalar_select %p134, %s135, %s136
      %p140 = pneg %p134
      %p141 = scmp.eq.s32.totalorder %s17, 1
      %p142 = por %p140, %p141
      %p143 = scmp.ne.s32.totalorder %s135, %s138
      %p144 = scmp.eq.s32.totalorder %s17, 0
      %p145 = por %p143, %p144
      %p146 = scmp.ne.s32.totalorder %s135, %s138
      %p147 = scmp.eq.s32.totalorder %s22, 1
      %p148 = por %p146, %p147
      %p149 = scmp.ne.s32.totalorder %s138, %s139
      %p150 = scmp.eq.s32.totalorder %s22, 0
      %p151 = por %p149, %p150
      %p152 = scmp.ne.s32.totalorder %s138, %s139
      %p153 = scmp.eq.s32.totalorder %s23, 1
      %p154 = por %p152, %p153
      %p156 = scmp.ne.s32.totalorder %s139, %s155
      %p157 = scmp.eq.s32.totalorder %s23, 0
      %p158 = por %p156, %p157
      %p159 = scmp.le.s32.totalorder 1, %s17
      %p160 = scmp.lt.s32.totalorder %s17, 3
      %p161 = pnand %p159, %p160
      %p162 = pneg %p161
      // Predicated region
      $region9: #{tpu_custom_call.1} parent=5 // pred_check
        _
      $region10: #{tpu_custom_call.1} parent=5 // pred_check_branch
        %164 = sbr.rel (%p161) target = $region12
      $region11: #{tpu_custom_call.1} parent=5 // pred_region
        %s165 = ssub.s32 %s17, 1
        // Predicated region
        $region13: #{tpu_custom_call.1} parent=11 // pred_check
          %p166 = pneg %p83
        $region14: #{tpu_custom_call.1} parent=11 // pred_check_branch
          %168 = sbr.rel (%p166) target = $region16
        $region15: #{tpu_custom_call.1} parent=11 // pred_region
          %s169 = smul.u32 32, %s27
          %s171 = ssub.s32 4096, 4096
          %172 = vsyncadd [#allocation7], %s171
          %s173 = smul.addr %s169, 128
          %s174 = scalar_lea.hbm %s1, %s173
          %s175 = sshll.u32 [#allocation6], 4
          %s176 = int_to_ptr.vmem [resolvable:$true] %s175
          %181 = dma.hbm_to_vmem [thread:$0]  %s174, 4096, %s176, [#allocation7], 128, 128, 8
        $region16: #{tpu_custom_call.1} parent=11 // pred_fallthru
          _
        // Predicated region
        $region17: #{tpu_custom_call.1} parent=11 // pred_check
          %p182 = pneg %p104
        $region18: #{tpu_custom_call.1} parent=11 // pred_check_branch
          %184 = sbr.rel (%p182) target = $region20
        $region19: #{tpu_custom_call.1} parent=11 // pred_region
          %s186 = ssub.s32 2048, 2048
          %187 = vsyncadd [#allocation7], %s186
          %s188 = sshll.u32 [#allocation8], 4
          %s189 = int_to_ptr.vmem [resolvable:$true] %s188
          %194 = dma.hbm_to_vmem [thread:$0]  %s2, 2048, %s189, [#allocation7], 128, 128, 8
        $region20: #{tpu_custom_call.1} parent=11 // pred_fallthru
          _
        // Predicated region
        $region21: #{tpu_custom_call.1} parent=11 // pred_check
          %p195 = pneg %p125
        $region22: #{tpu_custom_call.1} parent=11 // pred_check_branch
          %197 = sbr.rel (%p195) target = $region24
        $region23: #{tpu_custom_call.1} parent=11 // pred_region
          _
        $region24: #{tpu_custom_call.1} parent=11 // pred_fallthru
          _
      $region12: #{tpu_custom_call.1} parent=5 // pred_fallthru
        _
      %p198 = scmp.lt.s32.totalorder %s17, 2
      // Predicated region
      $region25: #{tpu_custom_call.1} parent=5 // pred_check
        %p199 = pneg %p198
      $region26: #{tpu_custom_call.1} parent=5 // pred_check_branch
        %201 = sbr.rel (%p199) target = $region28
      $region27: #{tpu_custom_call.1} parent=5 // pred_region
        // Predicated region
        $region29: #{tpu_custom_call.1} parent=27 // pred_check
          %p202 = pneg %p51
        $region30: #{tpu_custom_call.1} parent=27 // pred_check_branch
          %204 = sbr.rel (%p202) target = $region32
        $region31: #{tpu_custom_call.1} parent=27 // pred_region
          #allocation11 [shape = 'u32[6]{0}', space=smem, size = 0x18, scoped, tag = 'DMA stride descriptor']
          %s205 = sand.u32 %s41, 1
          %s206 = scalar_lea.sflag [#allocation4], %s205
          %s207 = sand.u32 %s41, 1
          %s208 = smul.addr %s207, 768
          %s209 = scalar_lea.vmem [#allocation3], %s208
          %s210 = smul.u32 16, %s24
          %s211 = smul.u32 2, %s25
          %s213 = ssub.s32 12288, 12288
          %214 = vsyncadd %s206, %s213
          %s215 = smul.addr %s210, 2
          %s216 = sadd.s32 %s211, %s215
          %s217 = smul.addr %s216, 128
          %s218 = scalar_lea.hbm %s0, %s217
          %s220 = sshll.u32 1, 14
          %s221 = sxor.u32 4294967295, %s220
          %s223 = sld [smem:[#allocation0]]
          %s224 = sadd.s32 2, %s223
          %s226 = sshll.u32 7, 26
          %s227 = sxor.u32 4294967295, %s226
          %s228 = sand.u32 0, %s227
          %s229 = sshll.u32 %s224, 26
          %s230 = sor.u32 %s228, %s229
          %s231 = sshll.u32 %s209, 4
          %s232 = int_to_ptr.vmem [resolvable:$true] %s231
          %238 = sst [smem:[#allocation11]] 8192
          %s239 = scalar_lea.smem [#allocation11], 1
          %240 = sst [smem:[%s239]] 4096
          %s241 = scalar_lea.smem [#allocation11], 2
          %242 = sst [smem:[%s241]] 16
          %s243 = scalar_lea.smem [#allocation11], 3
          %244 = sst [smem:[%s243]] 256
          %s245 = scalar_lea.smem [#allocation11], 4
          %246 = sst [smem:[%s245]] 256
          %s247 = scalar_lea.smem [#allocation11], 5
          %248 = sst [smem:[%s247]] 16
          %250 = dma.general %s218, 12288, %s232, %s206, [#allocation10], [#allocation11], %s230, 0
        $region32: #{tpu_custom_call.1} parent=27 // pred_fallthru
          _
      $region28: #{tpu_custom_call.1} parent=5 // pred_fallthru
        _
      %p251 = scmp.le.s32.totalorder 1, %s17
      %p252 = scmp.lt.s32.totalorder %s17, 3
      %p253 = pnand %p251, %p252
      %p254 = pneg %p253
      // Predicated region
      $region33: #{tpu_custom_call.1} parent=5 // pred_check
        _
      $region34: #{tpu_custom_call.1} parent=5 // pred_check_branch
        %256 = sbr.rel (%p253) target = $region36
      $region35: #{tpu_custom_call.1} parent=5 // pred_region
        %s257 = ssub.s32 %s17, 1
        %s258 = sand.u32 %s44, 1
        %s259 = scalar_lea.sflag [#allocation4], %s258
        %s260 = sand.u32 %s44, 1
        %s261 = smul.addr %s260, 768
        %s262 = scalar_lea.vmem [#allocation3], %s261
        // Predicated region
        $region37: #{tpu_custom_call.1} parent=35 // pred_check
          %p263 = pneg %p57
        $region38: #{tpu_custom_call.1} parent=35 // pred_check_branch
          %265 = sbr.rel (%p263) target = $region40
        $region39: #{tpu_custom_call.1} parent=35 // pred_region
          %266 = dma.done %s259, 12288
        $region40: #{tpu_custom_call.1} parent=35 // pred_fallthru
          _
        // Predicated region
        $region41: #{tpu_custom_call.1} parent=35 // pred_check
          %p267 = pneg %p83
        $region42: #{tpu_custom_call.1} parent=35 // pred_check_branch
          %269 = sbr.rel (%p267) target = $region44
        $region43: #{tpu_custom_call.1} parent=35 // pred_region
          %270 = dma.done [#allocation7], 4096
        $region44: #{tpu_custom_call.1} parent=35 // pred_fallthru
          _
        // Predicated region
        $region45: #{tpu_custom_call.1} parent=35 // pred_check
          %p271 = pneg %p104
        $region46: #{tpu_custom_call.1} parent=35 // pred_check_branch
          %273 = sbr.rel (%p271) target = $region48
        $region47: #{tpu_custom_call.1} parent=35 // pred_region
          %274 = dma.done [#allocation7], 2048
        $region48: #{tpu_custom_call.1} parent=35 // pred_fallthru
          _
        %s275 = sand.u32 %s44, 1
        %s276 = scalar_lea.sflag [#allocation4], %s275
        %s277 = sand.u32 %s44, 1
        %s278 = smul.addr %s277, 768
        %s279 = scalar_lea.vmem [#allocation3], %s278
        %p280 = pneg %p57
        %p281 = pneg %p54
        %p282 = pneg %p83
        %p283 = pneg %p80
        %p284 = pneg %p104
        %p285 = pneg %p101
        %p286 = pneg %p125
        %p287 = pneg %p122
        %p288 = pneg %p151
        %p289 = pneg %p148
        %s290 = sand.u32 %s138, 1
        %s291 = scalar_lea.sflag [#allocation5], %s290
        %s292 = sand.u32 %s138, 1
        %s293 = smul.addr %s292, 128
        %s294 = scalar_lea.vmem [#allocation9], %s293
        %s295 = smul.u32 16, %s26
        %s296 = smul.u32 2, %s27
        %s297 = smul.u32 32, %s27
        %s298 = smul.u32 16, %s26
        %p299 = scmp.eq.s32.totalorder %s27, 0
        // Predicated region
        $region49: #{tpu_custom_call.1} parent=35 // pred_check
          %p300 = pneg %p299
        $region50: #{tpu_custom_call.1} parent=35 // pred_check_branch
          %302 = sbr.rel (%p300) target = $region52
        $region51: #{tpu_custom_call.1} parent=35 // pred_region
          %303 = vst [vmem:[#allocation2] sm:$0xff] 0.0
          %304 = vst [vmem:[#allocation2 + $0x8] sm:$0xff] 0.0
          %305 = vst [vmem:[#allocation2 + $0x10] sm:$0xff] 0.0
          %306 = vst [vmem:[#allocation2 + $0x18] sm:$0xff] 0.0
          %307 = vst [vmem:[#allocation2 + $0x20] sm:$0xff] 0.0
          %308 = vst [vmem:[#allocation2 + $0x28] sm:$0xff] 0.0
          %309 = vst [vmem:[#allocation2 + $0x30] sm:$0xff] 0.0
          %310 = vst [vmem:[#allocation2 + $0x38] sm:$0xff] 0.0
          %311 = vst [vmem:[#allocation2 + $0x40] sm:$0xff] 0.0
          %312 = vst [vmem:[#allocation2 + $0x48] sm:$0xff] 0.0
          %313 = vst [vmem:[#allocation2 + $0x50] sm:$0xff] 0.0
          %314 = vst [vmem:[#allocation2 + $0x58] sm:$0xff] 0.0
          %315 = vst [vmem:[#allocation2 + $0x60] sm:$0xff] 0.0
          %316 = vst [vmem:[#allocation2 + $0x68] sm:$0xff] 0.0
          %317 = vst [vmem:[#allocation2 + $0x70] sm:$0xff] 0.0
          %318 = vst [vmem:[#allocation2 + $0x78] sm:$0xff] 0.0
        $region52: #{tpu_custom_call.1} parent=35 // pred_fallthru
          _
        %v319 = vld [vmem:[%s262] sm:$0xff]
        %v320 = vld [vmem:[%s262 + $0x8] sm:$0xff]
        %v321 = vld [vmem:[%s262 + $0x10] sm:$0xff]
        %v322 = vld [vmem:[%s262 + $0x18] sm:$0xff]
        %v323 = vld [vmem:[%s262 + $0x20] sm:$0xff]
        %v324 = vld [vmem:[%s262 + $0x28] sm:$0xff]
        %v325 = vld [vmem:[%s262 + $0x30] sm:$0xff]
        %v326 = vld [vmem:[%s262 + $0x38] sm:$0xff]
        %v327 = vld [vmem:[%s262 + $0x40] sm:$0xff]
        %v328 = vld [vmem:[%s262 + $0x48] sm:$0xff]
        %v329 = vld [vmem:[%s262 + $0x50] sm:$0xff]
        %v330 = vld [vmem:[%s262 + $0x58] sm:$0xff]
        %v331 = vld [vmem:[%s262 + $0x60] sm:$0xff]
        %v332 = vld [vmem:[%s262 + $0x68] sm:$0xff]
        %v333 = vld [vmem:[%s262 + $0x70] sm:$0xff]
        %v334 = vld [vmem:[%s262 + $0x78] sm:$0xff]
        %v335 = vld [vmem:[%s262 + $0x80] sm:$0xff]
        %v336 = vld [vmem:[%s262 + $0x88] sm:$0xff]
        %v337 = vld [vmem:[%s262 + $0x90] sm:$0xff]
        %v338 = vld [vmem:[%s262 + $0x98] sm:$0xff]
        %v339 = vld [vmem:[%s262 + $0xa0] sm:$0xff]
        %v340 = vld [vmem:[%s262 + $0xa8] sm:$0xff]
        %v341 = vld [vmem:[%s262 + $0xb0] sm:$0xff]
        %v342 = vld [vmem:[%s262 + $0xb8] sm:$0xff]
        %v343 = vld [vmem:[%s262 + $0xc0] sm:$0xff]
        %v344 = vld [vmem:[%s262 + $0xc8] sm:$0xff]
        %v345 = vld [vmem:[%s262 + $0xd0] sm:$0xff]
        %v346 = vld [vmem:[%s262 + $0xd8] sm:$0xff]
        %v347 = vld [vmem:[%s262 + $0xe0] sm:$0xff]
        %v348 = vld [vmem:[%s262 + $0xe8] sm:$0xff]
        %v349 = vld [vmem:[%s262 + $0xf0] sm:$0xff]
        %v350 = vld [vmem:[%s262 + $0xf8] sm:$0xff]
        %v351 = vld [vmem:[%s262 + $0x100] sm:$0xff]
        %v352 = vld [vmem:[%s262 + $0x108] sm:$0xff]
        %v353 = vld [vmem:[%s262 + $0x110] sm:$0xff]
        %v354 = vld [vmem:[%s262 + $0x118] sm:$0xff]
        %v355 = vld [vmem:[%s262 + $0x120] sm:$0xff]
        %v356 = vld [vmem:[%s262 + $0x128] sm:$0xff]
        %v357 = vld [vmem:[%s262 + $0x130] sm:$0xff]
        %v358 = vld [vmem:[%s262 + $0x138] sm:$0xff]
        %v359 = vld [vmem:[%s262 + $0x140] sm:$0xff]
        %v360 = vld [vmem:[%s262 + $0x148] sm:$0xff]
        %v361 = vld [vmem:[%s262 + $0x150] sm:$0xff]
        %v362 = vld [vmem:[%s262 + $0x158] sm:$0xff]
        %v363 = vld [vmem:[%s262 + $0x160] sm:$0xff]
        %v364 = vld [vmem:[%s262 + $0x168] sm:$0xff]
        %v365 = vld [vmem:[%s262 + $0x170] sm:$0xff]
        %v366 = vld [vmem:[%s262 + $0x178] sm:$0xff]
        %v367 = vld [vmem:[%s262 + $0x180] sm:$0xff]
        %v368 = vld [vmem:[%s262 + $0x188] sm:$0xff]
        %v369 = vld [vmem:[%s262 + $0x190] sm:$0xff]
        %v370 = vld [vmem:[%s262 + $0x198] sm:$0xff]
        %v371 = vld [vmem:[%s262 + $0x1a0] sm:$0xff]
        %v372 = vld [vmem:[%s262 + $0x1a8] sm:$0xff]
        %v373 = vld [vmem:[%s262 + $0x1b0] sm:$0xff]
        %v374 = vld [vmem:[%s262 + $0x1b8] sm:$0xff]
        %v375 = vld [vmem:[%s262 + $0x1c0] sm:$0xff]
        %v376 = vld [vmem:[%s262 + $0x1c8] sm:$0xff]
        %v377 = vld [vmem:[%s262 + $0x1d0] sm:$0xff]
        %v378 = vld [vmem:[%s262 + $0x1d8] sm:$0xff]
        %v379 = vld [vmem:[%s262 + $0x1e0] sm:$0xff]
        %v380 = vld [vmem:[%s262 + $0x1e8] sm:$0xff]
        %v381 = vld [vmem:[%s262 + $0x1f0] sm:$0xff]
        %v382 = vld [vmem:[%s262 + $0x1f8] sm:$0xff]
        %v383 = vld [vmem:[%s262 + $0x200] sm:$0xff]
        %v384 = vld [vmem:[%s262 + $0x208] sm:$0xff]
        %v385 = vld [vmem:[%s262 + $0x210] sm:$0xff]
        %v386 = vld [vmem:[%s262 + $0x218] sm:$0xff]
        %v387 = vld [vmem:[%s262 + $0x220] sm:$0xff]
        %v388 = vld [vmem:[%s262 + $0x228] sm:$0xff]
        %v389 = vld [vmem:[%s262 + $0x230] sm:$0xff]
        %v390 = vld [vmem:[%s262 + $0x238] sm:$0xff]
        %v391 = vld [vmem:[%s262 + $0x240] sm:$0xff]
        %v392 = vld [vmem:[%s262 + $0x248] sm:$0xff]
        %v393 = vld [vmem:[%s262 + $0x250] sm:$0xff]
        %v394 = vld [vmem:[%s262 + $0x258] sm:$0xff]
        %v395 = vld [vmem:[%s262 + $0x260] sm:$0xff]
        %v396 = vld [vmem:[%s262 + $0x268] sm:$0xff]
        %v397 = vld [vmem:[%s262 + $0x270] sm:$0xff]
        %v398 = vld [vmem:[%s262 + $0x278] sm:$0xff]
        %v399 = vld [vmem:[%s262 + $0x280] sm:$0xff]
        %v400 = vld [vmem:[%s262 + $0x288] sm:$0xff]
        %v401 = vld [vmem:[%s262 + $0x290] sm:$0xff]
        %v402 = vld [vmem:[%s262 + $0x298] sm:$0xff]
        %v403 = vld [vmem:[%s262 + $0x2a0] sm:$0xff]
        %v404 = vld [vmem:[%s262 + $0x2a8] sm:$0xff]
        %v405 = vld [vmem:[%s262 + $0x2b0] sm:$0xff]
        %v406 = vld [vmem:[%s262 + $0x2b8] sm:$0xff]
        %v407 = vld [vmem:[%s262 + $0x2c0] sm:$0xff]
        %v408 = vld [vmem:[%s262 + $0x2c8] sm:$0xff]
        %v409 = vld [vmem:[%s262 + $0x2d0] sm:$0xff]
        %v410 = vld [vmem:[%s262 + $0x2d8] sm:$0xff]
        %v411 = vld [vmem:[%s262 + $0x2e0] sm:$0xff]
        %v412 = vld [vmem:[%s262 + $0x2e8] sm:$0xff]
        %v413 = vld [vmem:[%s262 + $0x2f0] sm:$0xff]
        %v414 = vld [vmem:[%s262 + $0x2f8] sm:$0xff]
        %v415 = vadd.f32 %v319, %v351
        %v416 = vadd.f32 %v415, %v383
        %v417 = vadd.f32 %v320, %v352
        %v418 = vadd.f32 %v417, %v384
        %v419 = vadd.f32 %v321, %v353
        %v420 = vadd.f32 %v419, %v385
        %v421 = vadd.f32 %v322, %v354
        %v422 = vadd.f32 %v421, %v386
        %v423 = vadd.f32 %v323, %v355
        %v424 = vadd.f32 %v423, %v387
        %v425 = vadd.f32 %v324, %v356
        %v426 = vadd.f32 %v425, %v388
        %v427 = vadd.f32 %v325, %v357
        %v428 = vadd.f32 %v427, %v389
        %v429 = vadd.f32 %v326, %v358
        %v430 = vadd.f32 %v429, %v390
        %v431 = vadd.f32 %v327, %v359
        %v432 = vadd.f32 %v431, %v391
        %v433 = vadd.f32 %v328, %v360
        %v434 = vadd.f32 %v433, %v392
        %v435 = vadd.f32 %v329, %v361
        %v436 = vadd.f32 %v435, %v393
        %v437 = vadd.f32 %v330, %v362
        %v438 = vadd.f32 %v437, %v394
        %v439 = vadd.f32 %v331, %v363
        %v440 = vadd.f32 %v439, %v395
        %v441 = vadd.f32 %v332, %v364
        %v442 = vadd.f32 %v441, %v396
        %v443 = vadd.f32 %v333, %v365
        %v444 = vadd.f32 %v443, %v397
        %v445 = vadd.f32 %v334, %v366
        %v446 = vadd.f32 %v445, %v398
        %v447 = vadd.f32 %v335, %v367
        %v448 = vadd.f32 %v447, %v399
        %v449 = vadd.f32 %v336, %v368
        %v450 = vadd.f32 %v449, %v400
        %v451 = vadd.f32 %v337, %v369
        %v452 = vadd.f32 %v451, %v401
        %v453 = vadd.f32 %v338, %v370
        %v454 = vadd.f32 %v453, %v402
        %v455 = vadd.f32 %v339, %v371
        %v456 = vadd.f32 %v455, %v403
        %v457 = vadd.f32 %v340, %v372
        %v458 = vadd.f32 %v457, %v404
        %v459 = vadd.f32 %v341, %v373
        %v460 = vadd.f32 %v459, %v405
        %v461 = vadd.f32 %v342, %v374
        %v462 = vadd.f32 %v461, %v406
        %v463 = vadd.f32 %v343, %v375
        %v464 = vadd.f32 %v463, %v407
        %v465 = vadd.f32 %v344, %v376
        %v466 = vadd.f32 %v465, %v408
        %v467 = vadd.f32 %v345, %v377
        %v468 = vadd.f32 %v467, %v409
        %v469 = vadd.f32 %v346, %v378
        %v470 = vadd.f32 %v469, %v410
        %v471 = vadd.f32 %v347, %v379
        %v472 = vadd.f32 %v471, %v411
        %v473 = vadd.f32 %v348, %v380
        %v474 = vadd.f32 %v473, %v412
        %v475 = vadd.f32 %v349, %v381
        %v476 = vadd.f32 %v475, %v413
        %v477 = vadd.f32 %v350, %v382
        %v478 = vadd.f32 %v477, %v414
        %v479 = vld [vmem:[#allocation6] sm:$0xff]
        %v480 = vld [vmem:[#allocation6 + $0x8] sm:$0xff]
        %v481 = vld [vmem:[#allocation6 + $0x10] sm:$0xff]
        %v482 = vld [vmem:[#allocation6 + $0x18] sm:$0xff]
        %v483 = vld [vmem:[#allocation6 + $0x20] sm:$0xff]
        %v484 = vld [vmem:[#allocation6 + $0x28] sm:$0xff]
        %v485 = vld [vmem:[#allocation6 + $0x30] sm:$0xff]
        %v486 = vld [vmem:[#allocation6 + $0x38] sm:$0xff]
        %v487 = vld [vmem:[#allocation6 + $0x40] sm:$0xff]
        %v488 = vld [vmem:[#allocation6 + $0x48] sm:$0xff]
        %v489 = vld [vmem:[#allocation6 + $0x50] sm:$0xff]
        %v490 = vld [vmem:[#allocation6 + $0x58] sm:$0xff]
        %v491 = vld [vmem:[#allocation6 + $0x60] sm:$0xff]
        %v492 = vld [vmem:[#allocation6 + $0x68] sm:$0xff]
        %v493 = vld [vmem:[#allocation6 + $0x70] sm:$0xff]
        %v494 = vld [vmem:[#allocation6 + $0x78] sm:$0xff]
        %v495 = vld [vmem:[#allocation6 + $0x80] sm:$0xff]
        %v496 = vld [vmem:[#allocation6 + $0x88] sm:$0xff]
        %v497 = vld [vmem:[#allocation6 + $0x90] sm:$0xff]
        %v498 = vld [vmem:[#allocation6 + $0x98] sm:$0xff]
        %v499 = vld [vmem:[#allocation6 + $0xa0] sm:$0xff]
        %v500 = vld [vmem:[#allocation6 + $0xa8] sm:$0xff]
        %v501 = vld [vmem:[#allocation6 + $0xb0] sm:$0xff]
        %v502 = vld [vmem:[#allocation6 + $0xb8] sm:$0xff]
        %v503 = vld [vmem:[#allocation6 + $0xc0] sm:$0xff]
        %v504 = vld [vmem:[#allocation6 + $0xc8] sm:$0xff]
        %v505 = vld [vmem:[#allocation6 + $0xd0] sm:$0xff]
        %v506 = vld [vmem:[#allocation6 + $0xd8] sm:$0xff]
        %v507 = vld [vmem:[#allocation6 + $0xe0] sm:$0xff]
        %v508 = vld [vmem:[#allocation6 + $0xe8] sm:$0xff]
        %v509 = vld [vmem:[#allocation6 + $0xf0] sm:$0xff]
        %v510 = vld [vmem:[#allocation6 + $0xf8] sm:$0xff]
        %v511 = vld [vmem:[#allocation2] sm:$0xff]
        %v512 = vld [vmem:[#allocation2 + $0x8] sm:$0xff]
        %v513 = vld [vmem:[#allocation2 + $0x10] sm:$0xff]
        %v514 = vld [vmem:[#allocation2 + $0x18] sm:$0xff]
        %v515 = vld [vmem:[#allocation2 + $0x20] sm:$0xff]
        %v516 = vld [vmem:[#allocation2 + $0x28] sm:$0xff]
        %v517 = vld [vmem:[#allocation2 + $0x30] sm:$0xff]
        %v518 = vld [vmem:[#allocation2 + $0x38] sm:$0xff]
        %v519 = vld [vmem:[#allocation2 + $0x40] sm:$0xff]
        %v520 = vld [vmem:[#allocation2 + $0x48] sm:$0xff]
        %v521 = vld [vmem:[#allocation2 + $0x50] sm:$0xff]
        %v522 = vld [vmem:[#allocation2 + $0x58] sm:$0xff]
        %v523 = vld [vmem:[#allocation2 + $0x60] sm:$0xff]
        %v524 = vld [vmem:[#allocation2 + $0x68] sm:$0xff]
        %v525 = vld [vmem:[#allocation2 + $0x70] sm:$0xff]
        %v526 = vld [vmem:[#allocation2 + $0x78] sm:$0xff]
        %527 = vmatprep.subr.mxu0 0.0
        %528 = vmatpush1.msra.mxu0 %v479
        %529 = vmatprep.subr.mxu0 0.0
        %530 = vmatpush1.msra.mxu0 %v480
        %531 = vmatprep.subr.mxu0 0.0
        %532 = vmatpush1.msra.mxu0 %v481
        %533 = vmatprep.subr.mxu0 0.0
        %534 = vmatpush1.msra.mxu0 %v482
        %535 = vmatprep.subr.mxu0 0.0
        %536 = vmatpush1.msra.mxu0 %v483
        %537 = vmatprep.subr.mxu0 0.0
        %538 = vmatpush1.msra.mxu0 %v484
        %539 = vmatprep.subr.mxu0 0.0
        %540 = vmatpush1.msra.mxu0 %v485
        %541 = vmatprep.subr.mxu0 0.0
        %542 = vmatpush1.msra.mxu0 %v486
        %543 = vmatprep.subr.mxu0 0.0
        %544 = vmatpush1.msra.mxu0 %v487
        %545 = vmatprep.subr.mxu0 0.0
        %546 = vmatpush1.msra.mxu0 %v488
        %547 = vmatprep.subr.mxu0 0.0
        %548 = vmatpush1.msra.mxu0 %v489
        %549 = vmatprep.subr.mxu0 0.0
        %550 = vmatpush1.msra.mxu0 %v490
        %551 = vmatprep.subr.mxu0 0.0
        %552 = vmatpush1.msra.mxu0 %v491
        %553 = vmatprep.subr.mxu0 0.0
        %554 = vmatpush1.msra.mxu0 %v492
        %555 = vmatprep.subr.mxu0 0.0
        %556 = vmatpush1.msra.mxu0 %v493
        %557 = vmatprep.subr.mxu0 0.0
        %558 = vmatpush1.msra.mxu0 %v494
        %559 = vmatprep.subr.mxu0 0.0
        %560 = vmatpush1.msra.mxu0 %v495
        %561 = vmatprep.subr.mxu0 0.0
        %562 = vmatpush1.msra.mxu0 %v496
        %563 = vmatprep.subr.mxu0 0.0
        %564 = vmatpush1.msra.mxu0 %v497
        %565 = vmatprep.subr.mxu0 0.0
        %566 = vmatpush1.msra.mxu0 %v498
        %567 = vmatprep.subr.mxu0 0.0
        %568 = vmatpush1.msra.mxu0 %v499
        %569 = vmatprep.subr.mxu0 0.0
        %570 = vmatpush1.msra.mxu0 %v500
        %571 = vmatprep.subr.mxu0 0.0
        %572 = vmatpush1.msra.mxu0 %v501
        %573 = vmatprep.subr.mxu0 0.0
        %574 = vmatpush1.msra.mxu0 %v502
        %575 = vmatprep.subr.mxu0 0.0
        %576 = vmatpush1.msra.mxu0 %v503
        %577 = vmatprep.subr.mxu0 0.0
        %578 = vmatpush1.msra.mxu0 %v504
        %579 = vmatprep.subr.mxu0 0.0
        %580 = vmatpush1.msra.mxu0 %v505
        %581 = vmatprep.subr.mxu0 0.0
        %582 = vmatpush1.msra.mxu0 %v506
        %583 = vmatprep.subr.mxu0 0.0
        %584 = vmatpush1.msra.mxu0 %v507
        %585 = vmatprep.subr.mxu0 0.0
        %586 = vmatpush1.msra.mxu0 %v508
        %587 = vmatprep.subr.mxu0 0.0
        %588 = vmatpush1.msra.mxu0 %v509
        %589 = vmatprep.subr.mxu0 0.0
        %590 = vmatpush1.msra.mxu0 %v510
        %591 = vmatprep.mubr.f32.mxu0 %v418
        %592 = vmatmul.mubr.f32.gmra.mrb[0].mxu0 %v416
        %v593 = vpop.f32.mrb[0].mxu0
        %v594 = vadd.f32 0.0, %v593
        %v595 = vpop.f32.mrb[0].mxu0
        %596 = vmatprep.mubr.f32.mxu0 %v422
        %597 = vmatmul.mubr.f32.gmra.mrb[0].mxu0 %v420
        %v598 = vpop.f32.mrb[0].mxu0
        %v599 = vadd.f32 0.0, %v598
        %v600 = vpop.f32.mrb[0].mxu0
        %601 = vmatprep.mubr.f32.mxu0 %v426
        %602 = vmatmul.mubr.f32.gmra.mrb[0].mxu0 %v424
        %v603 = vpop.f32.mrb[0].mxu0
        %v604 = vadd.f32 0.0, %v603
        %v605 = vpop.f32.mrb[0].mxu0
        %606 = vmatprep.mubr.f32.mxu0 %v430
        %607 = vmatmul.mubr.f32.gmra.mrb[0].mxu0 %v428
        %v608 = vpop.f32.mrb[0].mxu0
        %v609 = vadd.f32 0.0, %v608
        %v610 = vpop.f32.mrb[0].mxu0
        %611 = vmatprep.mubr.f32.mxu0 %v434
        %612 = vmatmul.mubr.f32.gmra.mrb[0].mxu0 %v432
        %v613 = vpop.f32.mrb[0].mxu0
        %v614 = vadd.f32 0.0, %v613
        %v615 = vpop.f32.mrb[0].mxu0
        %616 = vmatprep.mubr.f32.mxu0 %v438
        %617 = vmatmul.mubr.f32.gmra.mrb[0].mxu0 %v436
        %v618 = vpop.f32.mrb[0].mxu0
        %v619 = vadd.f32 0.0, %v618
        %v620 = vpop.f32.mrb[0].mxu0
        %621 = vmatprep.mubr.f32.mxu0 %v442
        %622 = vmatmul.mubr.f32.gmra.mrb[0].mxu0 %v440
        %v623 = vpop.f32.mrb[0].mxu0
        %v624 = vadd.f32 0.0, %v623
        %v625 = vpop.f32.mrb[0].mxu0
        %626 = vmatprep.mubr.f32.mxu0 %v446
        %627 = vmatmul.mubr.f32.gmra.mrb[0].mxu0 %v444
        %v628 = vpop.f32.mrb[0].mxu0
        %v629 = vadd.f32 0.0, %v628
        %v630 = vpop.f32.mrb[0].mxu0
        %631 = vmatprep.mubr.f32.mxu0 %v450
        %632 = vmatmul.mubr.f32.gmra.mrb[0].mxu0 %v448
        %v633 = vpop.f32.mrb[0].mxu0
        %v634 = vadd.f32 0.0, %v633
        %v635 = vpop.f32.mrb[0].mxu0
        %636 = vmatprep.mubr.f32.mxu0 %v454
        %637 = vmatmul.mubr.f32.gmra.mrb[0].mxu0 %v452
        %v638 = vpop.f32.mrb[0].mxu0
        %v639 = vadd.f32 0.0, %v638
        %v640 = vpop.f32.mrb[0].mxu0
        %641 = vmatprep.mubr.f32.mxu0 %v458
        %642 = vmatmul.mubr.f32.gmra.mrb[0].mxu0 %v456
        %v643 = vpop.f32.mrb[0].mxu0
        %v644 = vadd.f32 0.0, %v643
        %v645 = vpop.f32.mrb[0].mxu0
        %646 = vmatprep.mubr.f32.mxu0 %v462
        %647 = vmatmul.mubr.f32.gmra.mrb[0].mxu0 %v460
        %v648 = vpop.f32.mrb[0].mxu0
        %v649 = vadd.f32 0.0, %v648
        %v650 = vpop.f32.mrb[0].mxu0
        %651 = vmatprep.mubr.f32.mxu0 %v466
        %652 = vmatmul.mubr.f32.gmra.mrb[0].mxu0 %v464
        %v653 = vpop.f32.mrb[0].mxu0
        %v654 = vadd.f32 0.0, %v653
        %v655 = vpop.f32.mrb[0].mxu0
        %656 = vmatprep.mubr.f32.mxu0 %v470
        %657 = vmatmul.mubr.f32.gmra.mrb[0].mxu0 %v468
        %v658 = vpop.f32.mrb[0].mxu0
        %v659 = vadd.f32 0.0, %v658
        %v660 = vpop.f32.mrb[0].mxu0
        %661 = vmatprep.mubr.f32.mxu0 %v474
        %662 = vmatmul.mubr.f32.gmra.mrb[0].mxu0 %v472
        %v663 = vpop.f32.mrb[0].mxu0
        %v664 = vadd.f32 0.0, %v663
        %v665 = vpop.f32.mrb[0].mxu0
        %666 = vmatprep.mubr.f32.mxu0 %v478
        %667 = vmatmul.mubr.f32.gmra.mrb[0].mxu0 %v476
        %v668 = vpop.f32.mrb[0].mxu0
        %v669 = vadd.f32 0.0, %v668
        %v670 = vpop.f32.mrb[0].mxu0
        %671 = vdwg.mxu0
        %v672 = vadd.f32 %v511, %v594
        %v673 = vadd.f32 %v512, %v599
        %v674 = vadd.f32 %v513, %v604
        %v675 = vadd.f32 %v514, %v609
        %v676 = vadd.f32 %v515, %v614
        %v677 = vadd.f32 %v516, %v619
        %v678 = vadd.f32 %v517, %v624
        %v679 = vadd.f32 %v518, %v629
        %v680 = vadd.f32 %v519, %v634
        %v681 = vadd.f32 %v520, %v639
        %v682 = vadd.f32 %v521, %v644
        %v683 = vadd.f32 %v522, %v649
        %v684 = vadd.f32 %v523, %v654
        %v685 = vadd.f32 %v524, %v659
        %v686 = vadd.f32 %v525, %v664
        %v687 = vadd.f32 %v526, %v669
        %688 = vst [vmem:[#allocation2] sm:$0xff] %v672
        %689 = vst [vmem:[#allocation2 + $0x8] sm:$0xff] %v673
        %690 = vst [vmem:[#allocation2 + $0x10] sm:$0xff] %v674
        %691 = vst [vmem:[#allocation2 + $0x18] sm:$0xff] %v675
        %692 = vst [vmem:[#allocation2 + $0x20] sm:$0xff] %v676
        %693 = vst [vmem:[#allocation2 + $0x28] sm:$0xff] %v677
        %694 = vst [vmem:[#allocation2 + $0x30] sm:$0xff] %v678
        %695 = vst [vmem:[#allocation2 + $0x38] sm:$0xff] %v679
        %696 = vst [vmem:[#allocation2 + $0x40] sm:$0xff] %v680
        %697 = vst [vmem:[#allocation2 + $0x48] sm:$0xff] %v681
        %698 = vst [vmem:[#allocation2 + $0x50] sm:$0xff] %v682
        %699 = vst [vmem:[#allocation2 + $0x58] sm:$0xff] %v683
        %700 = vst [vmem:[#allocation2 + $0x60] sm:$0xff] %v684
        %701 = vst [vmem:[#allocation2 + $0x68] sm:$0xff] %v685
        %702 = vst [vmem:[#allocation2 + $0x70] sm:$0xff] %v686
        %703 = vst [vmem:[#allocation2 + $0x78] sm:$0xff] %v687
        // Predicated region
        $region53: #{tpu_custom_call.1} parent=35 // pred_check
          %p704 = pneg %p299
        $region54: #{tpu_custom_call.1} parent=35 // pred_check_branch
          %706 = sbr.rel (%p704) target = $region56
        $region55: #{tpu_custom_call.1} parent=35 // pred_region
          %v707 = vld [vmem:[#allocation2] sm:$0xff]
          %v708 = vld [vmem:[#allocation2 + $0x8] sm:$0xff]
          %v709 = vld [vmem:[#allocation2 + $0x10] sm:$0xff]
          %v710 = vld [vmem:[#allocation2 + $0x18] sm:$0xff]
          %v711 = vld [vmem:[#allocation2 + $0x20] sm:$0xff]
          %v712 = vld [vmem:[#allocation2 + $0x28] sm:$0xff]
          %v713 = vld [vmem:[#allocation2 + $0x30] sm:$0xff]
          %v714 = vld [vmem:[#allocation2 + $0x38] sm:$0xff]
          %v715 = vld [vmem:[#allocation2 + $0x40] sm:$0xff]
          %v716 = vld [vmem:[#allocation2 + $0x48] sm:$0xff]
          %v717 = vld [vmem:[#allocation2 + $0x50] sm:$0xff]
          %v718 = vld [vmem:[#allocation2 + $0x58] sm:$0xff]
          %v719 = vld [vmem:[#allocation2 + $0x60] sm:$0xff]
          %v720 = vld [vmem:[#allocation2 + $0x68] sm:$0xff]
          %v721 = vld [vmem:[#allocation2 + $0x70] sm:$0xff]
          %v722 = vld [vmem:[#allocation2 + $0x78] sm:$0xff]
          %v723 = vld [vmem:[#allocation8] sm:$0xff]
          %v724 = vld [vmem:[#allocation8 + $0x8] sm:$0xff]
          %v725 = vld [vmem:[#allocation8 + $0x10] sm:$0xff]
          %v726 = vld [vmem:[#allocation8 + $0x18] sm:$0xff]
          %v727 = vld [vmem:[#allocation8 + $0x20] sm:$0xff]
          %v728 = vld [vmem:[#allocation8 + $0x28] sm:$0xff]
          %v729 = vld [vmem:[#allocation8 + $0x30] sm:$0xff]
          %v730 = vld [vmem:[#allocation8 + $0x38] sm:$0xff]
          %v731 = vld [vmem:[#allocation8 + $0x40] sm:$0xff]
          %v732 = vld [vmem:[#allocation8 + $0x48] sm:$0xff]
          %v733 = vld [vmem:[#allocation8 + $0x50] sm:$0xff]
          %v734 = vld [vmem:[#allocation8 + $0x58] sm:$0xff]
          %v735 = vld [vmem:[#allocation8 + $0x60] sm:$0xff]
          %v736 = vld [vmem:[#allocation8 + $0x68] sm:$0xff]
          %v737 = vld [vmem:[#allocation8 + $0x70] sm:$0xff]
          %v738 = vld [vmem:[#allocation8 + $0x78] sm:$0xff]
          %v739 = vld [vmem:[%s3] sm:$0x1]
          %v741 = vlaneseq
          %v742 = vshrl.u32 %v741, 7
          %v743 = vsub.s32 0, %v742
          %v744 = vrot.slane %v739, %v743
          %746 = vmatprep.subr.mxu0 0.0
          %747 = vmatpush1.msra.mxu0 %v723
          %748 = vmatprep.subr.mxu0 0.0
          %749 = vmatpush1.msra.mxu0 %v724
          %750 = vmatprep.subr.mxu0 0.0
          %751 = vmatpush1.msra.mxu0 %v725
          %752 = vmatprep.subr.mxu0 0.0
          %753 = vmatpush1.msra.mxu0 %v726
          %754 = vmatprep.subr.mxu0 0.0
          %755 = vmatpush1.msra.mxu0 %v727
          %756 = vmatprep.subr.mxu0 0.0
          %757 = vmatpush1.msra.mxu0 %v728
          %758 = vmatprep.subr.mxu0 0.0
          %759 = vmatpush1.msra.mxu0 %v729
          %760 = vmatprep.subr.mxu0 0.0
          %761 = vmatpush1.msra.mxu0 %v730
          %762 = vmatprep.subr.mxu0 0.0
          %763 = vmatpush1.msra.mxu0 %v731
          %764 = vmatprep.subr.mxu0 0.0
          %765 = vmatpush1.msra.mxu0 %v732
          %766 = vmatprep.subr.mxu0 0.0
          %767 = vmatpush1.msra.mxu0 %v733
          %768 = vmatprep.subr.mxu0 0.0
          %769 = vmatpush1.msra.mxu0 %v734
          %770 = vmatprep.subr.mxu0 0.0
          %771 = vmatpush1.msra.mxu0 %v735
          %772 = vmatprep.subr.mxu0 0.0
          %773 = vmatpush1.msra.mxu0 %v736
          %774 = vmatprep.subr.mxu0 0.0
          %775 = vmatpush1.msra.mxu0 %v737
          %776 = vmatprep.subr.mxu0 0.0
          %777 = vmatpush1.msra.mxu0 %v738
          %778 = vmatprep.subr.mxu0 0.0
          %779 = vmatpush1.msra.mxu0 0.0
          %780 = vmatprep.subr.mxu0 0.0
          %781 = vmatpush1.msra.mxu0 0.0
          %782 = vmatprep.subr.mxu0 0.0
          %783 = vmatpush1.msra.mxu0 0.0
          %784 = vmatprep.subr.mxu0 0.0
          %785 = vmatpush1.msra.mxu0 0.0
          %786 = vmatprep.subr.mxu0 0.0
          %787 = vmatpush1.msra.mxu0 0.0
          %788 = vmatprep.subr.mxu0 0.0
          %789 = vmatpush1.msra.mxu0 0.0
          %790 = vmatprep.subr.mxu0 0.0
          %791 = vmatpush1.msra.mxu0 0.0
          %792 = vmatprep.subr.mxu0 0.0
          %793 = vmatpush1.msra.mxu0 0.0
          %794 = vmatprep.subr.mxu0 0.0
          %795 = vmatpush1.msra.mxu0 0.0
          %796 = vmatprep.subr.mxu0 0.0
          %797 = vmatpush1.msra.mxu0 0.0
          %798 = vmatprep.subr.mxu0 0.0
          %799 = vmatpush1.msra.mxu0 0.0
          %800 = vmatprep.subr.mxu0 0.0
          %801 = vmatpush1.msra.mxu0 0.0
          %802 = vmatprep.subr.mxu0 0.0
          %803 = vmatpush1.msra.mxu0 0.0
          %804 = vmatprep.subr.mxu0 0.0
          %805 = vmatpush1.msra.mxu0 0.0
          %806 = vmatprep.subr.mxu0 0.0
          %807 = vmatpush1.msra.mxu0 0.0
          %808 = vmatprep.subr.mxu0 0.0
          %809 = vmatpush1.msra.mxu0 0.0
          %810 = vmatprep.mubr.f32.mxu0 0.0
          %811 = vmatmul.mubr.f32.gmra.mrb[0].mxu0 %v707
          %v812 = vpop.f32.mrb[0].mxu0
          %v813 = vadd.f32 %v744, %v812
          %v814 = vpop.f32.mrb[0].mxu0
          %815 = vmatprep.mubr.f32.mxu0 0.0
          %816 = vmatmul.mubr.f32.gmra.mrb[0].mxu0 %v708
          %v817 = vpop.f32.mrb[0].mxu0
          %v818 = vadd.f32 %v744, %v817
          %v819 = vpop.f32.mrb[0].mxu0
          %820 = vmatprep.mubr.f32.mxu0 0.0
          %821 = vmatmul.mubr.f32.gmra.mrb[0].mxu0 %v709
          %v822 = vpop.f32.mrb[0].mxu0
          %v823 = vadd.f32 %v744, %v822
          %v824 = vpop.f32.mrb[0].mxu0
          %825 = vmatprep.mubr.f32.mxu0 0.0
          %826 = vmatmul.mubr.f32.gmra.mrb[0].mxu0 %v710
          %v827 = vpop.f32.mrb[0].mxu0
          %v828 = vadd.f32 %v744, %v827
          %v829 = vpop.f32.mrb[0].mxu0
          %830 = vmatprep.mubr.f32.mxu0 0.0
          %831 = vmatmul.mubr.f32.gmra.mrb[0].mxu0 %v711
          %v832 = vpop.f32.mrb[0].mxu0
          %v833 = vadd.f32 %v744, %v832
          %v834 = vpop.f32.mrb[0].mxu0
          %835 = vmatprep.mubr.f32.mxu0 0.0
          %836 = vmatmul.mubr.f32.gmra.mrb[0].mxu0 %v712
          %v837 = vpop.f32.mrb[0].mxu0
          %v838 = vadd.f32 %v744, %v837
          %v839 = vpop.f32.mrb[0].mxu0
          %840 = vmatprep.mubr.f32.mxu0 0.0
          %841 = vmatmul.mubr.f32.gmra.mrb[0].mxu0 %v713
          %v842 = vpop.f32.mrb[0].mxu0
          %v843 = vadd.f32 %v744, %v842
          %v844 = vpop.f32.mrb[0].mxu0
          %845 = vmatprep.mubr.f32.mxu0 0.0
          %846 = vmatmul.mubr.f32.gmra.mrb[0].mxu0 %v714
          %v847 = vpop.f32.mrb[0].mxu0
          %v848 = vadd.f32 %v744, %v847
          %v849 = vpop.f32.mrb[0].mxu0
          %850 = vmatprep.mubr.f32.mxu0 0.0
          %851 = vmatmul.mubr.f32.gmra.mrb[0].mxu0 %v715
          %v852 = vpop.f32.mrb[0].mxu0
          %v853 = vadd.f32 %v744, %v852
          %v854 = vpop.f32.mrb[0].mxu0
          %855 = vmatprep.mubr.f32.mxu0 0.0
          %856 = vmatmul.mubr.f32.gmra.mrb[0].mxu0 %v716
          %v857 = vpop.f32.mrb[0].mxu0
          %v858 = vadd.f32 %v744, %v857
          %v859 = vpop.f32.mrb[0].mxu0
          %860 = vmatprep.mubr.f32.mxu0 0.0
          %861 = vmatmul.mubr.f32.gmra.mrb[0].mxu0 %v717
          %v862 = vpop.f32.mrb[0].mxu0
          %v863 = vadd.f32 %v744, %v862
          %v864 = vpop.f32.mrb[0].mxu0
          %865 = vmatprep.mubr.f32.mxu0 0.0
          %866 = vmatmul.mubr.f32.gmra.mrb[0].mxu0 %v718
          %v867 = vpop.f32.mrb[0].mxu0
          %v868 = vadd.f32 %v744, %v867
          %v869 = vpop.f32.mrb[0].mxu0
          %870 = vmatprep.mubr.f32.mxu0 0.0
          %871 = vmatmul.mubr.f32.gmra.mrb[0].mxu0 %v719
          %v872 = vpop.f32.mrb[0].mxu0
          %v873 = vadd.f32 %v744, %v872
          %v874 = vpop.f32.mrb[0].mxu0
          %875 = vmatprep.mubr.f32.mxu0 0.0
          %876 = vmatmul.mubr.f32.gmra.mrb[0].mxu0 %v720
          %v877 = vpop.f32.mrb[0].mxu0
          %v878 = vadd.f32 %v744, %v877
          %v879 = vpop.f32.mrb[0].mxu0
          %880 = vmatprep.mubr.f32.mxu0 0.0
          %881 = vmatmul.mubr.f32.gmra.mrb[0].mxu0 %v721
          %v882 = vpop.f32.mrb[0].mxu0
          %v883 = vadd.f32 %v744, %v882
          %v884 = vpop.f32.mrb[0].mxu0
          %885 = vmatprep.mubr.f32.mxu0 0.0
          %886 = vmatmul.mubr.f32.gmra.mrb[0].mxu0 %v722
          %v887 = vpop.f32.mrb[0].mxu0
          %v888 = vadd.f32 %v744, %v887
          %v889 = vpop.f32.mrb[0].mxu0
          %890 = vdwg.mxu0
          %891 = vst [vmem:[%s294] sm:$0xff] %v813
          %892 = vst [vmem:[%s294 + $0x8] sm:$0xff] %v818
          %893 = vst [vmem:[%s294 + $0x10] sm:$0xff] %v823
          %894 = vst [vmem:[%s294 + $0x18] sm:$0xff] %v828
          %895 = vst [vmem:[%s294 + $0x20] sm:$0xff] %v833
          %896 = vst [vmem:[%s294 + $0x28] sm:$0xff] %v838
          %897 = vst [vmem:[%s294 + $0x30] sm:$0xff] %v843
          %898 = vst [vmem:[%s294 + $0x38] sm:$0xff] %v848
          %899 = vst [vmem:[%s294 + $0x40] sm:$0xff] %v853
          %900 = vst [vmem:[%s294 + $0x48] sm:$0xff] %v858
          %901 = vst [vmem:[%s294 + $0x50] sm:$0xff] %v863
          %902 = vst [vmem:[%s294 + $0x58] sm:$0xff] %v868
          %903 = vst [vmem:[%s294 + $0x60] sm:$0xff] %v873
          %904 = vst [vmem:[%s294 + $0x68] sm:$0xff] %v878
          %905 = vst [vmem:[%s294 + $0x70] sm:$0xff] %v883
          %906 = vst [vmem:[%s294 + $0x78] sm:$0xff] %v888
        $region56: #{tpu_custom_call.1} parent=35 // pred_fallthru
          _
        %s907 = sand.u32 %s138, 1
        %s908 = scalar_lea.sflag [#allocation5], %s907
        %s909 = sand.u32 %s138, 1
        %s910 = smul.addr %s909, 128
        %s911 = scalar_lea.vmem [#allocation9], %s910
        // Predicated region
        $region57: #{tpu_custom_call.1} parent=35 // pred_check
          %p912 = pneg %p148
        $region58: #{tpu_custom_call.1} parent=35 // pred_check_branch
          %914 = sbr.rel (%p912) target = $region60
        $region59: #{tpu_custom_call.1} parent=35 // pred_region
          %s915 = smul.u32 16, %s26
          %s917 = ssub.s32 2048, 2048
          %918 = vsyncadd %s908, %s917
          %s919 = smul.addr %s915, 128
          %s920 = scalar_lea.hbm %s4, %s919
          %s921 = sshll.u32 %s911, 4
          %s922 = int_to_ptr.vmem [resolvable:$true] %s921
          %927 = dma.vmem_to_hbm [thread:$0]  %s922, 2048, %s920, %s908, 128, 128, 8
        $region60: #{tpu_custom_call.1} parent=35 // pred_fallthru
          _
      $region36: #{tpu_custom_call.1} parent=5 // pred_fallthru
        _
      %p928 = scmp.le.s32.totalorder 2, %s17
      // Predicated region
      $region61: #{tpu_custom_call.1} parent=5 // pred_check
        %p929 = pneg %p928
      $region62: #{tpu_custom_call.1} parent=5 // pred_check_branch
        %931 = sbr.rel (%p929) target = $region64
      $region63: #{tpu_custom_call.1} parent=5 // pred_region
        %s932 = ssub.s32 %s17, 2
        // Predicated region
        $region65: #{tpu_custom_call.1} parent=63 // pred_check
          %p933 = pneg %p154
        $region66: #{tpu_custom_call.1} parent=63 // pred_check_branch
          %935 = sbr.rel (%p933) target = $region68
        $region67: #{tpu_custom_call.1} parent=63 // pred_region
          %s936 = sand.u32 %s139, 1
          %s937 = scalar_lea.sflag [#allocation5], %s936
          %s938 = sand.u32 %s139, 1
          %s939 = smul.addr %s938, 128
          %s940 = scalar_lea.vmem [#allocation9], %s939
          %941 = dma.done %s937, 2048
        $region68: #{tpu_custom_call.1} parent=63 // pred_fallthru
          _
      $region64: #{tpu_custom_call.1} parent=5 // pred_fallthru
        _
    $region6: #{tpu_custom_call.1} parent=1 // loop_footer
      %s21 = sadd.s32 1, %s17
    $region7: #{tpu_custom_call.1} parent=1 // loop_footer_branch
      %16 = sbr.rel target = $region3
    $region8: #{tpu_custom_call.1} parent=1 // loop_exit
      _
    %942 = vsyncpa [#allocation4], 1
    %s943 = scalar_lea.sflag [#allocation4], 1
    %944 = vsyncpa %s943, 1
    %945 = vsyncpa [#allocation7], 1
    %946 = vsyncpa [#allocation5], 1
    %s947 = scalar_lea.sflag [#allocation5], 1
    %948 = vsyncpa %s947, 1

</llo_original>
